<compile_context>
chip_gen: v7x
topology: tpu7x:2x2x1
jax: 0.10.0
libtpu: 0.0.40
codegen_flags: <defaults>
</compile_context>

<pallas_src>
import functools

import jax
import jax.numpy as jnp
from jax.experimental import pallas as pl
from jax.experimental.pallas import tpu as pltpu


def _ds_conv_kernel(x_ref, twm_ref, pww_ref, pwb_ref, out_ref, *,
                    shifts, Nb, Cin, Cout):
    """Fused depthwise + pointwise 'same' conv for one block of Nb images.

    x_ref   : (Nb, Cin, H*W)          input block, spatial flattened on lanes
    twm_ref : (KH*KW, Cin, H*W) f32   per-tap depthwise weight * padding mask
    pww_ref : (Cout*Cin,)       f32   pointwise weights (SMEM scalars)
    pwb_ref : (Cout,)           f32   pointwise bias with dw bias folded in
    out_ref : (Nb, Cout, H*W)         output block (lane-dense stores)
    """
    for b in range(Nb):
        # Single up-front f32 cast per image; f32 accumulation throughout.
        xb = x_ref[b].astype(jnp.float32)                       # (Cin, H*W)

        # ---- depthwise: one lane-dense roll + FMA per tap, all Cin rows at once.
        # Rolls land on the (otherwise idle) XLU slot; padding is handled by the
        # zero entries baked into twm, so wrapped-around lanes never contribute.
        dep = None
        for t, sh in enumerate(shifts):
            win = xb if sh == 0 else pltpu.roll(xb, shift=sh, axis=1)
            term = win * twm_ref[t]
            dep = term if dep is None else dep + term

        dep_rows = [dep[c] for c in range(Cin)]                  # hoisted extracts

        # ---- pointwise 1x1: Cout x Cin scalar-broadcast FMAs on 256-lane rows.
        # Cin=4 / Cout=8 are far too small for the MXU; accumulators start from
        # their first product + folded bias (no jnp.full broadcasts).
        # TODO(synk): switch these Python-unrolled loops to
        # lax.fori_loop(..., unroll=True) if channel counts grow (vreg liveness).
        for o in range(Cout):
            acc = dep_rows[0] * pww_ref[o * Cin] + pwb_ref[o]
            for c in range(1, Cin):
                acc = acc + dep_rows[c] * pww_ref[o * Cin + c]
            out_ref[b, o, :] = acc.astype(out_ref.dtype)         # 256-lane dense store


def depth_separable_conv(x_nchw, dw_weight, dw_bias, pw_weight, pw_bias,
                         *, stride=1, padding=1, dilation=1):
    """Matches torch depth_separable_conv.forward semantics (NCHW in / NCHW out).

    x_nchw    : (N, Cin, H, W)
    dw_weight : (Cin, 1, KH, KW)   depthwise Conv2d weight (groups=Cin)
    dw_bias   : (Cin,)
    pw_weight : (Cout, Cin, 1, 1)  1x1 Conv2d weight
    pw_bias   : (Cout,)
    returns   : (N, Cout, Ho, Wo)
    """
    N, Cin, H, W = x_nchw.shape
    KH, KW = dw_weight.shape[2], dw_weight.shape[3]
    Cout = pw_weight.shape[0]

    Ho = (H + 2 * padding - dilation * (KH - 1) - 1) // stride + 1
    Wo = (W + 2 * padding - dilation * (KW - 1) - 1) // stride + 1

    if not (stride == 1 and Ho == H and Wo == W):
        # TODO(synk): non-'same' configs (stride>1, or output size != input size)
        # need a padded-stride scratch + strided output extraction; the module's
        # config (3x3, stride=1, padding=1, dilation=1) is what is implemented.
        raise NotImplementedError(
            "only stride=1 'same' depthwise-separable conv is implemented")

    L = H * W
    T = KH * KW

    # ---- weight prep (tiny, done once in the wrapper) ----
    dww = dw_weight[:, 0, :, :].reshape(Cin, T).astype(jnp.float32)     # (Cin, T)
    pww2 = pw_weight[:, :, 0, 0].astype(jnp.float32)                    # (Cout, Cin)
    # Fold depthwise bias into the pointwise bias: out = pww@dep + (pwb + pww@dwb).
    pwb_eff = pw_bias.astype(jnp.float32) + pww2 @ dw_bias.astype(jnp.float32)
    pww_flat = pww2.reshape(Cout * Cin)                                 # 1-D SMEM

    # Per-tap lane shift and (depthwise weight x zero-padding mask) vectors.
    rows = jnp.arange(H)
    cols = jnp.arange(W)
    shifts = []
    masks = []
    for kh in range(KH):
        for kw in range(KW):
            dh = kh * dilation - padding
            dw_off = kw * dilation - padding
            shifts.append((-(dh * W + dw_off)) % L)                     # static int
            mh = ((rows + dh) >= 0) & ((rows + dh) < H)
            mw = ((cols + dw_off) >= 0) & ((cols + dw_off) < W)
            masks.append((mh[:, None] & mw[None, :]).reshape(L))
    mask = jnp.stack(masks).astype(jnp.float32)                         # (T, L)
    twm = dww.T[:, :, None] * mask[:, None, :]                          # (T, Cin, L)

    # ---- batch blocking: amortize per-step overhead, but keep >= 2 grid steps
    # (parallel axis) so both v7x TensorCores get work, and keep per-step blocks
    # comfortably inside v7x's 64 MiB-per-core VMEM.
    vmem_budget = 8 * 1024 * 1024
    Nb = 1
    for nb in range(1, N + 1):
        if N % nb != 0:
            continue
        if N // nb < 2 and N >= 2:
            continue
        if nb * (Cin + Cout) * L * 4 * 2 > vmem_budget:
            continue
        Nb = nb
    grid = (N // Nb,)

    x_flat = x_nchw.reshape(N, Cin, L)          # free metadata reshape

    kernel = functools.partial(_ds_conv_kernel, shifts=tuple(shifts),
                               Nb=Nb, Cin=Cin, Cout=Cout)

    in_bytes = Nb * Cin * L * x_nchw.dtype.itemsize
    out_bytes = Nb * Cout * L * x_nchw.dtype.itemsize
    twm_bytes = T * Cin * L * 4
    vmem_limit = int(min(64 * 1024 * 1024,
                         max(4 * 1024 * 1024,
                             4 * (in_bytes + out_bytes + twm_bytes))))

    out = pl.pallas_call(
        kernel,
        out_shape=jax.ShapeDtypeStruct((N, Cout, L), x_nchw.dtype),
        grid_spec=pltpu.PrefetchScalarGridSpec(
            num_scalar_prefetch=0,
            grid=grid,
            in_specs=[
                pl.BlockSpec((Nb, Cin, L), lambda n: (n, 0, 0)),
                pl.BlockSpec((T, Cin, L), lambda n: (0, 0, 0)),        # taps: fetched once
                pl.BlockSpec(memory_space=pltpu.MemorySpace.SMEM),     # pww_flat
                pl.BlockSpec(memory_space=pltpu.MemorySpace.SMEM),     # pwb_eff
            ],
            out_specs=pl.BlockSpec((Nb, Cout, L), lambda n: (n, 0, 0)),
        ),
        compiler_params=pltpu.CompilerParams(
            dimension_semantics=("parallel",),
            vmem_limit_bytes=vmem_limit),
    )(x_flat, twm, pww_flat, pwb_eff)

    return out.reshape(N, Cout, Ho, Wo)         # free metadata reshape


def _reference(x_nchw, dw_weight, dw_bias, pw_weight, pw_bias,
               *, stride, padding, dilation):
    """Pure-JAX reference using lax.conv_general_dilated (matches torch Conv2d)."""
    Cin = x_nchw.shape[1]
    dep = jax.lax.conv_general_dilated(
        x_nchw, dw_weight,
        window_strides=(stride, stride),
        padding=((padding, padding), (padding, padding)),
        rhs_dilation=(dilation, dilation),
        dimension_numbers=("NCHW", "OIHW", "NCHW"),
        feature_group_count=Cin,
    ) + dw_bias.reshape(1, Cin, 1, 1)
    out = jax.lax.conv_general_dilated(
        dep, pw_weight,
        window_strides=(1, 1),
        padding=((0, 0), (0, 0)),
        dimension_numbers=("NCHW", "OIHW", "NCHW"),
    ) + pw_bias.reshape(1, -1, 1, 1)
    return out


if __name__ == "__main__":
    # Small shapes consistent with the module: in_ch=4, out_ch=8, 3x3 depthwise,
    # stride=1, padding=1, dilation=1, input (2, 4, 16, 16).
    N, Cin, H, W = 2, 4, 16, 16
    Cout, KH, KW = 8, 3, 3
    stride, padding, dilation = 1, 1, 1

    key = jax.random.PRNGKey(0)
    kx, k1, k2, k3, k4 = jax.random.split(key, 5)
    x = jax.random.normal(kx, (N, Cin, H, W), dtype=jnp.float32)
    dw_weight = jax.random.normal(k1, (Cin, 1, KH, KW), dtype=jnp.float32) * 0.1
    dw_bias = jax.random.normal(k2, (Cin,), dtype=jnp.float32) * 0.1
    pw_weight = jax.random.normal(k3, (Cout, Cin, 1, 1), dtype=jnp.float32) * 0.1
    pw_bias = jax.random.normal(k4, (Cout,), dtype=jnp.float32) * 0.1

    out = depth_separable_conv(x, dw_weight, dw_bias, pw_weight, pw_bias,
                               stride=stride, padding=padding, dilation=dilation)
    out = jax.block_until_ready(out)

    ref = _reference(x, dw_weight, dw_bias, pw_weight, pw_bias,
                     stride=stride, padding=padding, dilation=dilation)
    assert out.shape == ref.shape == (N, Cout, H, W)
    assert jnp.allclose(out, ref, atol=1e-4, rtol=1e-4), "mismatch vs reference"

    print("KERNEL_OK")
</pallas_src>

<mosaic_0001>
module attributes {stable_mosaic.version = 11 : i64} {
  func.func @_ds_conv_kernel(%arg0: i32, %arg1: memref<1x4x256xf32, #tpu.memory_space<vmem>>, %arg2: memref<9x4x256xf32, #tpu.memory_space<vmem>>, %arg3: memref<32xf32, #tpu.memory_space<smem>>, %arg4: memref<8xf32, #tpu.memory_space<smem>>, %arg5: memref<1x8x256xf32, #tpu.memory_space<vmem>>) attributes {dimension_semantics = [#tpu.dimension_semantics<parallel>], iteration_bounds = array<i64: 2>, scalar_prefetch = 0 : i64, scratch_operands = 0 : i64, tpu.core_type = #tpu.core_type<tc>, window_params = [{transform_indices = @transform_0, window_bounds = array<i64: 1, 4, 256>}, {pipeline_mode = #tpu.pipeline_mode<synchronous>, transform_indices = @transform_1, window_bounds = array<i64: 9, 4, 256>}, {transform_indices = @transform_2, window_bounds = array<i64: 32>}, {transform_indices = @transform_3, window_bounds = array<i64: 8>}, {transform_indices = @transform_4, window_bounds = array<i64: 1, 8, 256>}]} {
    %c0 = arith.constant 0 : index
    %c0_0 = arith.constant 0 : index
    %c0_1 = arith.constant 0 : index
    %0 = vector.load %arg1[%c0, %c0_0, %c0_1] : memref<1x4x256xf32, #tpu.memory_space<vmem>>, vector<1x4x256xf32>
    %1 = vector.shape_cast %0 : vector<1x4x256xf32> to vector<4x256xf32>
    %c17_i32 = arith.constant 17 : i32
    %2 = tpu.dynamic_rotate %1 by %c17_i32 dim 1 : vector<4x256xf32>, i32 -> vector<4x256xf32>
    %c0_2 = arith.constant 0 : index
    %c0_3 = arith.constant 0 : index
    %c0_4 = arith.constant 0 : index
    %3 = vector.load %arg2[%c0_2, %c0_3, %c0_4] : memref<9x4x256xf32, #tpu.memory_space<vmem>>, vector<1x4x256xf32>
    %4 = vector.shape_cast %3 : vector<1x4x256xf32> to vector<4x256xf32>
    %5 = arith.mulf %2, %4 : vector<4x256xf32>
    %c16_i32 = arith.constant 16 : i32
    %6 = tpu.dynamic_rotate %1 by %c16_i32 dim 1 : vector<4x256xf32>, i32 -> vector<4x256xf32>
    %c1 = arith.constant 1 : index
    %c0_5 = arith.constant 0 : index
    %c0_6 = arith.constant 0 : index
    %7 = vector.load %arg2[%c1, %c0_5, %c0_6] : memref<9x4x256xf32, #tpu.memory_space<vmem>>, vector<1x4x256xf32>
    %8 = vector.shape_cast %7 : vector<1x4x256xf32> to vector<4x256xf32>
    %9 = arith.mulf %6, %8 : vector<4x256xf32>
    %10 = arith.addf %5, %9 : vector<4x256xf32>
    %c15_i32 = arith.constant 15 : i32
    %11 = tpu.dynamic_rotate %1 by %c15_i32 dim 1 : vector<4x256xf32>, i32 -> vector<4x256xf32>
    %c2 = arith.constant 2 : index
    %c0_7 = arith.constant 0 : index
    %c0_8 = arith.constant 0 : index
    %12 = vector.load %arg2[%c2, %c0_7, %c0_8] : memref<9x4x256xf32, #tpu.memory_space<vmem>>, vector<1x4x256xf32>
    %13 = vector.shape_cast %12 : vector<1x4x256xf32> to vector<4x256xf32>
    %14 = arith.mulf %11, %13 : vector<4x256xf32>
    %15 = arith.addf %10, %14 : vector<4x256xf32>
    %c1_i32 = arith.constant 1 : i32
    %16 = tpu.dynamic_rotate %1 by %c1_i32 dim 1 : vector<4x256xf32>, i32 -> vector<4x256xf32>
    %c3 = arith.constant 3 : index
    %c0_9 = arith.constant 0 : index
    %c0_10 = arith.constant 0 : index
    %17 = vector.load %arg2[%c3, %c0_9, %c0_10] : memref<9x4x256xf32, #tpu.memory_space<vmem>>, vector<1x4x256xf32>
    %18 = vector.shape_cast %17 : vector<1x4x256xf32> to vector<4x256xf32>
    %19 = arith.mulf %16, %18 : vector<4x256xf32>
    %20 = arith.addf %15, %19 : vector<4x256xf32>
    %c4 = arith.constant 4 : index
    %c0_11 = arith.constant 0 : index
    %c0_12 = arith.constant 0 : index
    %21 = vector.load %arg2[%c4, %c0_11, %c0_12] : memref<9x4x256xf32, #tpu.memory_space<vmem>>, vector<1x4x256xf32>
    %22 = vector.shape_cast %21 : vector<1x4x256xf32> to vector<4x256xf32>
    %23 = arith.mulf %1, %22 : vector<4x256xf32>
    %24 = arith.addf %20, %23 : vector<4x256xf32>
    %c255_i32 = arith.constant 255 : i32
    %25 = tpu.dynamic_rotate %1 by %c255_i32 dim 1 : vector<4x256xf32>, i32 -> vector<4x256xf32>
    %c5 = arith.constant 5 : index
    %c0_13 = arith.constant 0 : index
    %c0_14 = arith.constant 0 : index
    %26 = vector.load %arg2[%c5, %c0_13, %c0_14] : memref<9x4x256xf32, #tpu.memory_space<vmem>>, vector<1x4x256xf32>
    %27 = vector.shape_cast %26 : vector<1x4x256xf32> to vector<4x256xf32>
    %28 = arith.mulf %25, %27 : vector<4x256xf32>
    %29 = arith.addf %24, %28 : vector<4x256xf32>
    %c241_i32 = arith.constant 241 : i32
    %30 = tpu.dynamic_rotate %1 by %c241_i32 dim 1 : vector<4x256xf32>, i32 -> vector<4x256xf32>
    %c6 = arith.constant 6 : index
    %c0_15 = arith.constant 0 : index
    %c0_16 = arith.constant 0 : index
    %31 = vector.load %arg2[%c6, %c0_15, %c0_16] : memref<9x4x256xf32, #tpu.memory_space<vmem>>, vector<1x4x256xf32>
    %32 = vector.shape_cast %31 : vector<1x4x256xf32> to vector<4x256xf32>
    %33 = arith.mulf %30, %32 : vector<4x256xf32>
    %34 = arith.addf %29, %33 : vector<4x256xf32>
    %c240_i32 = arith.constant 240 : i32
    %35 = tpu.dynamic_rotate %1 by %c240_i32 dim 1 : vector<4x256xf32>, i32 -> vector<4x256xf32>
    %c7 = arith.constant 7 : index
    %c0_17 = arith.constant 0 : index
    %c0_18 = arith.constant 0 : index
    %36 = vector.load %arg2[%c7, %c0_17, %c0_18] : memref<9x4x256xf32, #tpu.memory_space<vmem>>, vector<1x4x256xf32>
    %37 = vector.shape_cast %36 : vector<1x4x256xf32> to vector<4x256xf32>
    %38 = arith.mulf %35, %37 : vector<4x256xf32>
    %39 = arith.addf %34, %38 : vector<4x256xf32>
    %c239_i32 = arith.constant 239 : i32
    %40 = tpu.dynamic_rotate %1 by %c239_i32 dim 1 : vector<4x256xf32>, i32 -> vector<4x256xf32>
    %c8 = arith.constant 8 : index
    %c0_19 = arith.constant 0 : index
    %c0_20 = arith.constant 0 : index
    %41 = vector.load %arg2[%c8, %c0_19, %c0_20] : memref<9x4x256xf32, #tpu.memory_space<vmem>>, vector<1x4x256xf32>
    %42 = vector.shape_cast %41 : vector<1x4x256xf32> to vector<4x256xf32>
    %43 = arith.mulf %40, %42 : vector<4x256xf32>
    %44 = arith.addf %39, %43 : vector<4x256xf32>
    %45 = vector.extract_strided_slice %44 {offsets = [0, 0], sizes = [1, 256], strides = [1, 1]} : vector<4x256xf32> to vector<1x256xf32>
    %46 = vector.shape_cast %45 : vector<1x256xf32> to vector<256xf32>
    %47 = vector.extract_strided_slice %44 {offsets = [1, 0], sizes = [1, 256], strides = [1, 1]} : vector<4x256xf32> to vector<1x256xf32>
    %48 = vector.shape_cast %47 : vector<1x256xf32> to vector<256xf32>
    %49 = vector.extract_strided_slice %44 {offsets = [2, 0], sizes = [1, 256], strides = [1, 1]} : vector<4x256xf32> to vector<1x256xf32>
    %50 = vector.shape_cast %49 : vector<1x256xf32> to vector<256xf32>
    %51 = vector.extract_strided_slice %44 {offsets = [3, 0], sizes = [1, 256], strides = [1, 1]} : vector<4x256xf32> to vector<1x256xf32>
    %52 = vector.shape_cast %51 : vector<1x256xf32> to vector<256xf32>
    %c0_21 = arith.constant 0 : index
    %53 = memref.load %arg3[%c0_21] : memref<32xf32, #tpu.memory_space<smem>>
    %54 = vector.broadcast %53 : f32 to vector<256xf32>
    %55 = arith.mulf %46, %54 : vector<256xf32>
    %c0_22 = arith.constant 0 : index
    %56 = memref.load %arg4[%c0_22] : memref<8xf32, #tpu.memory_space<smem>>
    %57 = vector.broadcast %56 : f32 to vector<256xf32>
    %58 = arith.addf %55, %57 : vector<256xf32>
    %c1_23 = arith.constant 1 : index
    %59 = memref.load %arg3[%c1_23] : memref<32xf32, #tpu.memory_space<smem>>
    %60 = vector.broadcast %59 : f32 to vector<256xf32>
    %61 = arith.mulf %48, %60 : vector<256xf32>
    %62 = arith.addf %58, %61 : vector<256xf32>
    %c2_24 = arith.constant 2 : index
    %63 = memref.load %arg3[%c2_24] : memref<32xf32, #tpu.memory_space<smem>>
    %64 = vector.broadcast %63 : f32 to vector<256xf32>
    %65 = arith.mulf %50, %64 : vector<256xf32>
    %66 = arith.addf %62, %65 : vector<256xf32>
    %c3_25 = arith.constant 3 : index
    %67 = memref.load %arg3[%c3_25] : memref<32xf32, #tpu.memory_space<smem>>
    %68 = vector.broadcast %67 : f32 to vector<256xf32>
    %69 = arith.mulf %52, %68 : vector<256xf32>
    %70 = arith.addf %66, %69 : vector<256xf32>
    %c0_26 = arith.constant 0 : index
    %c0_27 = arith.constant 0 : index
    %c0_28 = arith.constant 0 : index
    %71 = vector.load %arg5[%c0_26, %c0_27, %c0_28] : memref<1x8x256xf32, #tpu.memory_space<vmem>>, vector<1x1x256xf32>
    %72 = vector.shape_cast %71 : vector<1x1x256xf32> to vector<256xf32>
    %73 = vector.shape_cast %70 : vector<256xf32> to vector<1x1x256xf32>
    tpu.vector_store %arg5[%c0_26, %c0_27, %c0_28], %73 {strides = array<i32>} : memref<1x8x256xf32, #tpu.memory_space<vmem>>, vector<1x1x256xf32>,
    %c4_29 = arith.constant 4 : index
    %74 = memref.load %arg3[%c4_29] : memref<32xf32, #tpu.memory_space<smem>>
    %75 = vector.broadcast %74 : f32 to vector<256xf32>
    %76 = arith.mulf %46, %75 : vector<256xf32>
    %c1_30 = arith.constant 1 : index
    %77 = memref.load %arg4[%c1_30] : memref<8xf32, #tpu.memory_space<smem>>
    %78 = vector.broadcast %77 : f32 to vector<256xf32>
    %79 = arith.addf %76, %78 : vector<256xf32>
    %c5_31 = arith.constant 5 : index
    %80 = memref.load %arg3[%c5_31] : memref<32xf32, #tpu.memory_space<smem>>
    %81 = vector.broadcast %80 : f32 to vector<256xf32>
    %82 = arith.mulf %48, %81 : vector<256xf32>
    %83 = arith.addf %79, %82 : vector<256xf32>
    %c6_32 = arith.constant 6 : index
    %84 = memref.load %arg3[%c6_32] : memref<32xf32, #tpu.memory_space<smem>>
    %85 = vector.broadcast %84 : f32 to vector<256xf32>
    %86 = arith.mulf %50, %85 : vector<256xf32>
    %87 = arith.addf %83, %86 : vector<256xf32>
    %c7_33 = arith.constant 7 : index
    %88 = memref.load %arg3[%c7_33] : memref<32xf32, #tpu.memory_space<smem>>
    %89 = vector.broadcast %88 : f32 to vector<256xf32>
    %90 = arith.mulf %52, %89 : vector<256xf32>
    %91 = arith.addf %87, %90 : vector<256xf32>
    %c0_34 = arith.constant 0 : index
    %c1_35 = arith.constant 1 : index
    %c0_36 = arith.constant 0 : index
    %92 = vector.load %arg5[%c0_34, %c1_35, %c0_36] : memref<1x8x256xf32, #tpu.memory_space<vmem>>, vector<1x1x256xf32>
    %93 = vector.shape_cast %92 : vector<1x1x256xf32> to vector<256xf32>
    %94 = vector.shape_cast %91 : vector<256xf32> to vector<1x1x256xf32>
    tpu.vector_store %arg5[%c0_34, %c1_35, %c0_36], %94 {strides = array<i32>} : memref<1x8x256xf32, #tpu.memory_space<vmem>>, vector<1x1x256xf32>,
    %c8_37 = arith.constant 8 : index
    %95 = memref.load %arg3[%c8_37] : memref<32xf32, #tpu.memory_space<smem>>
    %96 = vector.broadcast %95 : f32 to vector<256xf32>
    %97 = arith.mulf %46, %96 : vector<256xf32>
    %c2_38 = arith.constant 2 : index
    %98 = memref.load %arg4[%c2_38] : memref<8xf32, #tpu.memory_space<smem>>
    %99 = vector.broadcast %98 : f32 to vector<256xf32>
    %100 = arith.addf %97, %99 : vector<256xf32>
    %c9 = arith.constant 9 : index
    %101 = memref.load %arg3[%c9] : memref<32xf32, #tpu.memory_space<smem>>
    %102 = vector.broadcast %101 : f32 to vector<256xf32>
    %103 = arith.mulf %48, %102 : vector<256xf32>
    %104 = arith.addf %100, %103 : vector<256xf32>
    %c10 = arith.constant 10 : index
    %105 = memref.load %arg3[%c10] : memref<32xf32, #tpu.memory_space<smem>>
    %106 = vector.broadcast %105 : f32 to vector<256xf32>
    %107 = arith.mulf %50, %106 : vector<256xf32>
    %108 = arith.addf %104, %107 : vector<256xf32>
    %c11 = arith.constant 11 : index
    %109 = memref.load %arg3[%c11] : memref<32xf32, #tpu.memory_space<smem>>
    %110 = vector.broadcast %109 : f32 to vector<256xf32>
    %111 = arith.mulf %52, %110 : vector<256xf32>
    %112 = arith.addf %108, %111 : vector<256xf32>
    %c0_39 = arith.constant 0 : index
    %c2_40 = arith.constant 2 : index
    %c0_41 = arith.constant 0 : index
    %113 = vector.load %arg5[%c0_39, %c2_40, %c0_41] : memref<1x8x256xf32, #tpu.memory_space<vmem>>, vector<1x1x256xf32>
    %114 = vector.shape_cast %113 : vector<1x1x256xf32> to vector<256xf32>
    %115 = vector.shape_cast %112 : vector<256xf32> to vector<1x1x256xf32>
    tpu.vector_store %arg5[%c0_39, %c2_40, %c0_41], %115 {strides = array<i32>} : memref<1x8x256xf32, #tpu.memory_space<vmem>>, vector<1x1x256xf32>,
    %c12 = arith.constant 12 : index
    %116 = memref.load %arg3[%c12] : memref<32xf32, #tpu.memory_space<smem>>
    %117 = vector.broadcast %116 : f32 to vector<256xf32>
    %118 = arith.mulf %46, %117 : vector<256xf32>
    %c3_42 = arith.constant 3 : index
    %119 = memref.load %arg4[%c3_42] : memref<8xf32, #tpu.memory_space<smem>>
    %120 = vector.broadcast %119 : f32 to vector<256xf32>
    %121 = arith.addf %118, %120 : vector<256xf32>
    %c13 = arith.constant 13 : index
    %122 = memref.load %arg3[%c13] : memref<32xf32, #tpu.memory_space<smem>>
    %123 = vector.broadcast %122 : f32 to vector<256xf32>
    %124 = arith.mulf %48, %123 : vector<256xf32>
    %125 = arith.addf %121, %124 : vector<256xf32>
    %c14 = arith.constant 14 : index
    %126 = memref.load %arg3[%c14] : memref<32xf32, #tpu.memory_space<smem>>
    %127 = vector.broadcast %126 : f32 to vector<256xf32>
    %128 = arith.mulf %50, %127 : vector<256xf32>
    %129 = arith.addf %125, %128 : vector<256xf32>
    %c15 = arith.constant 15 : index
    %130 = memref.load %arg3[%c15] : memref<32xf32, #tpu.memory_space<smem>>
    %131 = vector.broadcast %130 : f32 to vector<256xf32>
    %132 = arith.mulf %52, %131 : vector<256xf32>
    %133 = arith.addf %129, %132 : vector<256xf32>
    %c0_43 = arith.constant 0 : index
    %c3_44 = arith.constant 3 : index
    %c0_45 = arith.constant 0 : index
    %134 = vector.load %arg5[%c0_43, %c3_44, %c0_45] : memref<1x8x256xf32, #tpu.memory_space<vmem>>, vector<1x1x256xf32>
    %135 = vector.shape_cast %134 : vector<1x1x256xf32> to vector<256xf32>
    %136 = vector.shape_cast %133 : vector<256xf32> to vector<1x1x256xf32>
    tpu.vector_store %arg5[%c0_43, %c3_44, %c0_45], %136 {strides = array<i32>} : memref<1x8x256xf32, #tpu.memory_space<vmem>>, vector<1x1x256xf32>,
    %c16 = arith.constant 16 : index
    %137 = memref.load %arg3[%c16] : memref<32xf32, #tpu.memory_space<smem>>
    %138 = vector.broadcast %137 : f32 to vector<256xf32>
    %139 = arith.mulf %46, %138 : vector<256xf32>
    %c4_46 = arith.constant 4 : index
    %140 = memref.load %arg4[%c4_46] : memref<8xf32, #tpu.memory_space<smem>>
    %141 = vector.broadcast %140 : f32 to vector<256xf32>
    %142 = arith.addf %139, %141 : vector<256xf32>
    %c17 = arith.constant 17 : index
    %143 = memref.load %arg3[%c17] : memref<32xf32, #tpu.memory_space<smem>>
    %144 = vector.broadcast %143 : f32 to vector<256xf32>
    %145 = arith.mulf %48, %144 : vector<256xf32>
    %146 = arith.addf %142, %145 : vector<256xf32>
    %c18 = arith.constant 18 : index
    %147 = memref.load %arg3[%c18] : memref<32xf32, #tpu.memory_space<smem>>
    %148 = vector.broadcast %147 : f32 to vector<256xf32>
    %149 = arith.mulf %50, %148 : vector<256xf32>
    %150 = arith.addf %146, %149 : vector<256xf32>
    %c19 = arith.constant 19 : index
    %151 = memref.load %arg3[%c19] : memref<32xf32, #tpu.memory_space<smem>>
    %152 = vector.broadcast %151 : f32 to vector<256xf32>
    %153 = arith.mulf %52, %152 : vector<256xf32>
    %154 = arith.addf %150, %153 : vector<256xf32>
    %c0_47 = arith.constant 0 : index
    %c4_48 = arith.constant 4 : index
    %c0_49 = arith.constant 0 : index
    %155 = vector.load %arg5[%c0_47, %c4_48, %c0_49] : memref<1x8x256xf32, #tpu.memory_space<vmem>>, vector<1x1x256xf32>
    %156 = vector.shape_cast %155 : vector<1x1x256xf32> to vector<256xf32>
    %157 = vector.shape_cast %154 : vector<256xf32> to vector<1x1x256xf32>
    tpu.vector_store %arg5[%c0_47, %c4_48, %c0_49], %157 {strides = array<i32>} : memref<1x8x256xf32, #tpu.memory_space<vmem>>, vector<1x1x256xf32>,
    %c20 = arith.constant 20 : index
    %158 = memref.load %arg3[%c20] : memref<32xf32, #tpu.memory_space<smem>>
    %159 = vector.broadcast %158 : f32 to vector<256xf32>
    %160 = arith.mulf %46, %159 : vector<256xf32>
    %c5_50 = arith.constant 5 : index
    %161 = memref.load %arg4[%c5_50] : memref<8xf32, #tpu.memory_space<smem>>
    %162 = vector.broadcast %161 : f32 to vector<256xf32>
    %163 = arith.addf %160, %162 : vector<256xf32>
    %c21 = arith.constant 21 : index
    %164 = memref.load %arg3[%c21] : memref<32xf32, #tpu.memory_space<smem>>
    %165 = vector.broadcast %164 : f32 to vector<256xf32>
    %166 = arith.mulf %48, %165 : vector<256xf32>
    %167 = arith.addf %163, %166 : vector<256xf32>
    %c22 = arith.constant 22 : index
    %168 = memref.load %arg3[%c22] : memref<32xf32, #tpu.memory_space<smem>>
    %169 = vector.broadcast %168 : f32 to vector<256xf32>
    %170 = arith.mulf %50, %169 : vector<256xf32>
    %171 = arith.addf %167, %170 : vector<256xf32>
    %c23 = arith.constant 23 : index
    %172 = memref.load %arg3[%c23] : memref<32xf32, #tpu.memory_space<smem>>
    %173 = vector.broadcast %172 : f32 to vector<256xf32>
    %174 = arith.mulf %52, %173 : vector<256xf32>
    %175 = arith.addf %171, %174 : vector<256xf32>
    %c0_51 = arith.constant 0 : index
    %c5_52 = arith.constant 5 : index
    %c0_53 = arith.constant 0 : index
    %176 = vector.load %arg5[%c0_51, %c5_52, %c0_53] : memref<1x8x256xf32, #tpu.memory_space<vmem>>, vector<1x1x256xf32>
    %177 = vector.shape_cast %176 : vector<1x1x256xf32> to vector<256xf32>
    %178 = vector.shape_cast %175 : vector<256xf32> to vector<1x1x256xf32>
    tpu.vector_store %arg5[%c0_51, %c5_52, %c0_53], %178 {strides = array<i32>} : memref<1x8x256xf32, #tpu.memory_space<vmem>>, vector<1x1x256xf32>,
    %c24 = arith.constant 24 : index
    %179 = memref.load %arg3[%c24] : memref<32xf32, #tpu.memory_space<smem>>
    %180 = vector.broadcast %179 : f32 to vector<256xf32>
    %181 = arith.mulf %46, %180 : vector<256xf32>
    %c6_54 = arith.constant 6 : index
    %182 = memref.load %arg4[%c6_54] : memref<8xf32, #tpu.memory_space<smem>>
    %183 = vector.broadcast %182 : f32 to vector<256xf32>
    %184 = arith.addf %181, %183 : vector<256xf32>
    %c25 = arith.constant 25 : index
    %185 = memref.load %arg3[%c25] : memref<32xf32, #tpu.memory_space<smem>>
    %186 = vector.broadcast %185 : f32 to vector<256xf32>
    %187 = arith.mulf %48, %186 : vector<256xf32>
    %188 = arith.addf %184, %187 : vector<256xf32>
    %c26 = arith.constant 26 : index
    %189 = memref.load %arg3[%c26] : memref<32xf32, #tpu.memory_space<smem>>
    %190 = vector.broadcast %189 : f32 to vector<256xf32>
    %191 = arith.mulf %50, %190 : vector<256xf32>
    %192 = arith.addf %188, %191 : vector<256xf32>
    %c27 = arith.constant 27 : index
    %193 = memref.load %arg3[%c27] : memref<32xf32, #tpu.memory_space<smem>>
    %194 = vector.broadcast %193 : f32 to vector<256xf32>
    %195 = arith.mulf %52, %194 : vector<256xf32>
    %196 = arith.addf %192, %195 : vector<256xf32>
    %c0_55 = arith.constant 0 : index
    %c6_56 = arith.constant 6 : index
    %c0_57 = arith.constant 0 : index
    %197 = vector.load %arg5[%c0_55, %c6_56, %c0_57] : memref<1x8x256xf32, #tpu.memory_space<vmem>>, vector<1x1x256xf32>
    %198 = vector.shape_cast %197 : vector<1x1x256xf32> to vector<256xf32>
    %199 = vector.shape_cast %196 : vector<256xf32> to vector<1x1x256xf32>
    tpu.vector_store %arg5[%c0_55, %c6_56, %c0_57], %199 {strides = array<i32>} : memref<1x8x256xf32, #tpu.memory_space<vmem>>, vector<1x1x256xf32>,
    %c28 = arith.constant 28 : index
    %200 = memref.load %arg3[%c28] : memref<32xf32, #tpu.memory_space<smem>>
    %201 = vector.broadcast %200 : f32 to vector<256xf32>
    %202 = arith.mulf %46, %201 : vector<256xf32>
    %c7_58 = arith.constant 7 : index
    %203 = memref.load %arg4[%c7_58] : memref<8xf32, #tpu.memory_space<smem>>
    %204 = vector.broadcast %203 : f32 to vector<256xf32>
    %205 = arith.addf %202, %204 : vector<256xf32>
    %c29 = arith.constant 29 : index
    %206 = memref.load %arg3[%c29] : memref<32xf32, #tpu.memory_space<smem>>
    %207 = vector.broadcast %206 : f32 to vector<256xf32>
    %208 = arith.mulf %48, %207 : vector<256xf32>
    %209 = arith.addf %205, %208 : vector<256xf32>
    %c30 = arith.constant 30 : index
    %210 = memref.load %arg3[%c30] : memref<32xf32, #tpu.memory_space<smem>>
    %211 = vector.broadcast %210 : f32 to vector<256xf32>
    %212 = arith.mulf %50, %211 : vector<256xf32>
    %213 = arith.addf %209, %212 : vector<256xf32>
    %c31 = arith.constant 31 : index
    %214 = memref.load %arg3[%c31] : memref<32xf32, #tpu.memory_space<smem>>
    %215 = vector.broadcast %214 : f32 to vector<256xf32>
    %216 = arith.mulf %52, %215 : vector<256xf32>
    %217 = arith.addf %213, %216 : vector<256xf32>
    %c0_59 = arith.constant 0 : index
    %c7_60 = arith.constant 7 : index
    %c0_61 = arith.constant 0 : index
    %218 = vector.load %arg5[%c0_59, %c7_60, %c0_61] : memref<1x8x256xf32, #tpu.memory_space<vmem>>, vector<1x1x256xf32>
    %219 = vector.shape_cast %218 : vector<1x1x256xf32> to vector<256xf32>
    %220 = vector.shape_cast %217 : vector<256xf32> to vector<1x1x256xf32>
    tpu.vector_store %arg5[%c0_59, %c7_60, %c0_61], %220 {strides = array<i32>} : memref<1x8x256xf32, #tpu.memory_space<vmem>>, vector<1x1x256xf32>,
    return
  }
  func.func @transform_0(%arg0: i32) -> (i32, i32, i32) {
    %c0_i32 = arith.constant 0 : i32
    %c0_i32_0 = arith.constant 0 : i32
    %c0_i32_1 = arith.constant 0 : i32
    return %arg0, %c0_i32, %c0_i32_0 : i32, i32, i32
  }
  func.func @transform_1(%arg0: i32) -> (i32, i32, i32) {
    %c0_i32 = arith.constant 0 : i32
    %c0_i32_0 = arith.constant 0 : i32
    %c0_i32_1 = arith.constant 0 : i32
    %c0_i32_2 = arith.constant 0 : i32
    return %c0_i32, %c0_i32_0, %c0_i32_1 : i32, i32, i32
  }
  func.func @transform_2(%arg0: i32) -> i32 {
    %c0_i32 = arith.constant 0 : i32
    %c0_i32_0 = arith.constant 0 : i32
    return %c0_i32 : i32
  }
  func.func @transform_3(%arg0: i32) -> i32 {
    %c0_i32 = arith.constant 0 : i32
    %c0_i32_0 = arith.constant 0 : i32
    return %c0_i32 : i32
  }
  func.func @transform_4(%arg0: i32) -> (i32, i32, i32) {
    %c0_i32 = arith.constant 0 : i32
    %c0_i32_0 = arith.constant 0 : i32
    %c0_i32_1 = arith.constant 0 : i32
    return %arg0, %c0_i32, %c0_i32_0 : i32, i32, i32
  }
}

</mosaic_0001>

<llo_original>
// kernel: tpu_custom_call.1
$region0: #{tpu_custom_call.1}
  #allocation0 [shape = 'u32[]', space=smem, size = 0x4, offset = 0x4, fixed_abs, tag = 'smem constant byte address 0x4 - core index']
  #allocation1 [shape = 'u32[144,128]{1,0:T(1,128)}', space=vmem, size = 0x12000, scoped, tag = 'internal scratch']
  %s0 = inlined_call_operand.hbm [shape: f32[2,4,256], index: 0, kind: input, shape index: {}]
  %s1 = inlined_call_operand.hbm [shape: f32[9,4,256], index: 1, kind: input, shape index: {}]
  %s2 = inlined_call_operand.vmem [shape: f32[32], index: 2, kind: input, shape index: {}]
  %s3 = inlined_call_operand.vmem [shape: f32[8], index: 3, kind: input, shape index: {}]
  %s4 = inlined_call_operand.hbm [shape: f32[2,8,256], index: 4, kind: output, shape index: {}]
  %s5 = sld [smem:[#allocation0]]
  $region65: #{tpu_custom_call.1} parent=0
    _
  %s7 = ssub.s32 1, %s5
  %s8 = scalar_select 0, %s7, %s5
  $region1: #{tpu_custom_call.1} parent=0
    #allocation2 [shape = 'u8[8192]{0}', space=vmem, size = 0x2000, scoped, tag = 'input window, operand 0']
    #allocation3 [shape = 's32[2]{0}', space=sflag, size = 0x8, scoped, tag = 'scoped memory for tpu_custom_call.1']
    #allocation4 [shape = 's32[2]{0}', space=sflag, size = 0x8, scoped, tag = 'scoped memory for tpu_custom_call.1']
    #allocation5 [shape = 's32[2]{0}', space=sflag, size = 0x8, scoped, tag = 'scoped memory for tpu_custom_call.1']
    #allocation6 [shape = 'u8[36864]{0}', space=vmem, size = 0x9000, scoped, tag = 'input window, operand 1, single buffered']
    #allocation7 [shape = 's32[1]{0}', space=sflag, size = 0x4, scoped, tag = 'scoped memory for tpu_custom_call.1']
    #allocation8 [shape = 'u8[512]{0}', space=smem, size = 0x200, scoped, tag = 'input window, operand 2, single buffered']
    #allocation9 [shape = 'u8[512]{0}', space=smem, size = 0x200, scoped, tag = 'input window, operand 3, single buffered']
    #allocation10 [shape = 's32[1]{0}', space=sflag, size = 0x4, scoped, tag = 'scoped memory for tpu_custom_call.1']
    #allocation11 [shape = 'u8[16384]{0}', space=vmem, size = 0x4000, scoped, tag = 'output window, operand 0']
    %9 = vsyncpa [#allocation3], 0
    %s10 = scalar_lea.sflag [#allocation3], 1
    %11 = vsyncpa %s10, 0
    %12 = vsyncpa [#allocation7], 0
    %13 = vsyncpa [#allocation5], 0
    %14 = vsyncpa [#allocation10], 0
    %15 = vsyncpa [#allocation4], 0
    %s16 = scalar_lea.sflag [#allocation4], 1
    %17 = vsyncpa %s16, 0
    loop: start=0, step=1, limit=4
    $region2: #{tpu_custom_call.1} parent=1 // loop_pre_header
      _
    $region3: #{tpu_custom_call.1} parent=1 // loop_header
      %s19 = sphi 0, %s23
      %p20 = scmp.ge.s32.totalorder %s19, 4
      %s29 = sphi 0, %s31
      %s32 = sphi 0, %s29
      %s33 = sphi 0, %s32
      %s49 = sphi 0, %s33
      %s53 = sphi 0, %s53
      %s55 = sphi 0, %s53
      %s56 = sphi 0, %s55
      %s70 = sphi 0, %s56
      %s74 = sphi 0, %s74
      %s76 = sphi 0, %s74
      %s77 = sphi 0, %s76
      %s91 = sphi 0, %s77
      %s95 = sphi 0, %s95
      %s97 = sphi 0, %s95
      %s98 = sphi 0, %s97
      %s112 = sphi 0, %s98
      %s118 = sphi 0, %s120
      %s121 = sphi 0, %s118
      %s122 = sphi 0, %s121
      %s138 = sphi 0, %s122
    $region4: #{tpu_custom_call.1} parent=1 // loop_header_branch
      %22 = sbr.rel (%p20) target = $region8
    $region5: #{tpu_custom_call.1} parent=1 // loop_body
      %s24 = ssub.s32 %s19, 1
      %s25 = ssub.s32 %s19, 2
      %s26 = sadd.s32 %s19, 1
      %s27 = ssub.s32 %s19, %s26
      %p28 = scmp.eq.s32.totalorder %s27, 0
      %s30 = sadd.s32 %s29, 1
      %s31 = scalar_select %p28, %s29, %s30
      %p34 = pneg %p28
      %p35 = scmp.eq.s32.totalorder %s19, 1
      %p36 = por %p34, %p35
      %p37 = scmp.ne.s32.totalorder %s29, %s32
      %p38 = scmp.eq.s32.totalorder %s19, 0
      %p39 = por %p37, %p38
      %p40 = scmp.ne.s32.totalorder %s29, %s32
      %p41 = scmp.eq.s32.totalorder %s24, 1
      %p42 = por %p40, %p41
      %p43 = scmp.ne.s32.totalorder %s32, %s33
      %p44 = scmp.eq.s32.totalorder %s24, 0
      %p45 = por %p43, %p44
      %p46 = scmp.ne.s32.totalorder %s32, %s33
      %p47 = scmp.eq.s32.totalorder %s25, 1
      %p48 = por %p46, %p47
      %p50 = scmp.ne.s32.totalorder %s33, %s49
      %p51 = scmp.eq.s32.totalorder %s25, 0
      %p52 = por %p50, %p51
      %s54 = sadd.s32 %s53, 1
      %p57 = scmp.eq.s32.totalorder %s19, 1
      %p58 = scmp.ne.s32.totalorder %s53, %s55
      %p59 = scmp.eq.s32.totalorder %s19, 0
      %p60 = por %p58, %p59
      %p61 = scmp.ne.s32.totalorder %s53, %s55
      %p62 = scmp.eq.s32.totalorder %s24, 1
      %p63 = por %p61, %p62
      %p64 = scmp.ne.s32.totalorder %s55, %s56
      %p65 = scmp.eq.s32.totalorder %s24, 0
      %p66 = por %p64, %p65
      %p67 = scmp.ne.s32.totalorder %s55, %s56
      %p68 = scmp.eq.s32.totalorder %s25, 1
      %p69 = por %p67, %p68
      %p71 = scmp.ne.s32.totalorder %s56, %s70
      %p72 = scmp.eq.s32.totalorder %s25, 0
      %p73 = por %p71, %p72
      %s75 = sadd.s32 %s74, 1
      %p78 = scmp.eq.s32.totalorder %s19, 1
      %p79 = scmp.ne.s32.totalorder %s74, %s76
      %p80 = scmp.eq.s32.totalorder %s19, 0
      %p81 = por %p79, %p80
      %p82 = scmp.ne.s32.totalorder %s74, %s76
      %p83 = scmp.eq.s32.totalorder %s24, 1
      %p84 = por %p82, %p83
      %p85 = scmp.ne.s32.totalorder %s76, %s77
      %p86 = scmp.eq.s32.totalorder %s24, 0
      %p87 = por %p85, %p86
      %p88 = scmp.ne.s32.totalorder %s76, %s77
      %p89 = scmp.eq.s32.totalorder %s25, 1
      %p90 = por %p88, %p89
      %p92 = scmp.ne.s32.totalorder %s77, %s91
      %p93 = scmp.eq.s32.totalorder %s25, 0
      %p94 = por %p92, %p93
      %s96 = sadd.s32 %s95, 1
      %p99 = scmp.eq.s32.totalorder %s19, 1
      %p100 = scmp.ne.s32.totalorder %s95, %s97
      %p101 = scmp.eq.s32.totalorder %s19, 0
      %p102 = por %p100, %p101
      %p103 = scmp.ne.s32.totalorder %s95, %s97
      %p104 = scmp.eq.s32.totalorder %s24, 1
      %p105 = por %p103, %p104
      %p106 = scmp.ne.s32.totalorder %s97, %s98
      %p107 = scmp.eq.s32.totalorder %s24, 0
      %p108 = por %p106, %p107
      %p109 = scmp.ne.s32.totalorder %s97, %s98
      %p110 = scmp.eq.s32.totalorder %s25, 1
      %p111 = por %p109, %p110
      %p113 = scmp.ne.s32.totalorder %s98, %s112
      %p114 = scmp.eq.s32.totalorder %s25, 0
      %p115 = por %p113, %p114
      %s116 = ssub.s32 %s19, %s26
      %p117 = scmp.eq.s32.totalorder %s116, 0
      %s119 = sadd.s32 %s118, 1
      %s120 = scalar_select %p117, %s118, %s119
      %p123 = pneg %p117
      %p124 = scmp.eq.s32.totalorder %s19, 1
      %p125 = por %p123, %p124
      %p126 = scmp.ne.s32.totalorder %s118, %s121
      %p127 = scmp.eq.s32.totalorder %s19, 0
      %p128 = por %p126, %p127
      %p129 = scmp.ne.s32.totalorder %s118, %s121
      %p130 = scmp.eq.s32.totalorder %s24, 1
      %p131 = por %p129, %p130
      %p132 = scmp.ne.s32.totalorder %s121, %s122
      %p133 = scmp.eq.s32.totalorder %s24, 0
      %p134 = por %p132, %p133
      %p135 = scmp.ne.s32.totalorder %s121, %s122
      %p136 = scmp.eq.s32.totalorder %s25, 1
      %p137 = por %p135, %p136
      %p139 = scmp.ne.s32.totalorder %s122, %s138
      %p140 = scmp.eq.s32.totalorder %s25, 0
      %p141 = por %p139, %p140
      %p142 = scmp.le.s32.totalorder 1, %s19
      %p143 = scmp.lt.s32.totalorder %s19, 3
      %p144 = pnand %p142, %p143
      %p145 = pneg %p144
      // Predicated region
      $region9: #{tpu_custom_call.1} parent=5 // pred_check
        _
      $region10: #{tpu_custom_call.1} parent=5 // pred_check_branch
        %147 = sbr.rel (%p144) target = $region12
      $region11: #{tpu_custom_call.1} parent=5 // pred_region
        %s148 = ssub.s32 %s19, 1
        // Predicated region
        $region13: #{tpu_custom_call.1} parent=11 // pred_check
          %p149 = pneg %p66
        $region14: #{tpu_custom_call.1} parent=11 // pred_check_branch
          %151 = sbr.rel (%p149) target = $region16
        $region15: #{tpu_custom_call.1} parent=11 // pred_region
          %s153 = ssub.s32 1152, 1152
          %154 = vsyncadd [#allocation7], %s153
          %s155 = sshll.u32 [#allocation6], 4
          %s156 = int_to_ptr.vmem [resolvable:$true] %s155
          %161 = dma.hbm_to_vmem [thread:$0]  %s1, 1152, %s156, [#allocation7], 128, 128, 8
        $region16: #{tpu_custom_call.1} parent=11 // pred_fallthru
          _
        // Predicated region
        $region17: #{tpu_custom_call.1} parent=11 // pred_check
          %p162 = pneg %p87
        $region18: #{tpu_custom_call.1} parent=11 // pred_check_branch
          %164 = sbr.rel (%p162) target = $region20
        $region19: #{tpu_custom_call.1} parent=11 // pred_region
          %s166 = ssub.s32 16, 16
          %167 = vsyncadd [#allocation5], %s166
          %s169 = sshll.u32 %s2, 4
          %s170 = int_to_ptr.vmem [resolvable:$true] %s169
          %172 = dma.vmem_to_smem %s170, 16, [#allocation8], [#allocation5]
        $region20: #{tpu_custom_call.1} parent=11 // pred_fallthru
          _
        // Predicated region
        $region21: #{tpu_custom_call.1} parent=11 // pred_check
          %p173 = pneg %p108
        $region22: #{tpu_custom_call.1} parent=11 // pred_check_branch
          %175 = sbr.rel (%p173) target = $region24
        $region23: #{tpu_custom_call.1} parent=11 // pred_region
          %s177 = ssub.s32 16, 16
          %178 = vsyncadd [#allocation10], %s177
          %s180 = sshll.u32 %s3, 4
          %s181 = int_to_ptr.vmem [resolvable:$true] %s180
          %183 = dma.vmem_to_smem %s181, 16, [#allocation9], [#allocation10]
        $region24: #{tpu_custom_call.1} parent=11 // pred_fallthru
          _
      $region12: #{tpu_custom_call.1} parent=5 // pred_fallthru
        _
      %p184 = scmp.lt.s32.totalorder %s19, 2
      // Predicated region
      $region25: #{tpu_custom_call.1} parent=5 // pred_check
        %p185 = pneg %p184
      $region26: #{tpu_custom_call.1} parent=5 // pred_check_branch
        %187 = sbr.rel (%p185) target = $region28
      $region27: #{tpu_custom_call.1} parent=5 // pred_region
        // Predicated region
        $region29: #{tpu_custom_call.1} parent=27 // pred_check
          %p188 = pneg %p39
        $region30: #{tpu_custom_call.1} parent=27 // pred_check_branch
          %190 = sbr.rel (%p188) target = $region32
        $region31: #{tpu_custom_call.1} parent=27 // pred_region
          %s191 = sand.u32 %s29, 1
          %s192 = scalar_lea.sflag [#allocation3], %s191
          %s193 = sand.u32 %s29, 1
          %s194 = smul.addr %s193, 8
          %s195 = scalar_lea.vmem [#allocation2], %s194
          %s197 = ssub.s32 128, 128
          %198 = vsyncadd %s192, %s197
          %s199 = smul.addr %s19, 2
          %s200 = smul.addr %s199, 64
          %s201 = scalar_lea.hbm %s0, %s200
          %s203 = sshll.u32 %s195, 4
          %s204 = int_to_ptr.vmem [resolvable:$true] %s203
          %206 = dma.hbm_to_vmem [thread:$0]  %s201, 128, %s204, %s192
        $region32: #{tpu_custom_call.1} parent=27 // pred_fallthru
          _
      $region28: #{tpu_custom_call.1} parent=5 // pred_fallthru
        _
      %p207 = scmp.le.s32.totalorder 1, %s19
      %p208 = scmp.lt.s32.totalorder %s19, 3
      %p209 = pnand %p207, %p208
      %p210 = pneg %p209
      // Predicated region
      $region33: #{tpu_custom_call.1} parent=5 // pred_check
        _
      $region34: #{tpu_custom_call.1} parent=5 // pred_check_branch
        %212 = sbr.rel (%p209) target = $region36
      $region35: #{tpu_custom_call.1} parent=5 // pred_region
        %s213 = ssub.s32 %s19, 1
        %s214 = sand.u32 %s32, 1
        %s215 = scalar_lea.sflag [#allocation3], %s214
        %s216 = sand.u32 %s32, 1
        %s217 = smul.addr %s216, 8
        %s218 = scalar_lea.vmem [#allocation2], %s217
        // Predicated region
        $region37: #{tpu_custom_call.1} parent=35 // pred_check
          %p219 = pneg %p45
        $region38: #{tpu_custom_call.1} parent=35 // pred_check_branch
          %221 = sbr.rel (%p219) target = $region40
        $region39: #{tpu_custom_call.1} parent=35 // pred_region
          %222 = dma.done %s215, 128
        $region40: #{tpu_custom_call.1} parent=35 // pred_fallthru
          _
        // Predicated region
        $region41: #{tpu_custom_call.1} parent=35 // pred_check
          %p223 = pneg %p66
        $region42: #{tpu_custom_call.1} parent=35 // pred_check_branch
          %225 = sbr.rel (%p223) target = $region44
        $region43: #{tpu_custom_call.1} parent=35 // pred_region
          %226 = dma.done [#allocation7], 1152
        $region44: #{tpu_custom_call.1} parent=35 // pred_fallthru
          _
        // Predicated region
        $region45: #{tpu_custom_call.1} parent=35 // pred_check
          %p227 = pneg %p87
        $region46: #{tpu_custom_call.1} parent=35 // pred_check_branch
          %229 = sbr.rel (%p227) target = $region48
        $region47: #{tpu_custom_call.1} parent=35 // pred_region
          %230 = dma.done [#allocation5], 16
        $region48: #{tpu_custom_call.1} parent=35 // pred_fallthru
          _
        // Predicated region
        $region49: #{tpu_custom_call.1} parent=35 // pred_check
          %p231 = pneg %p108
        $region50: #{tpu_custom_call.1} parent=35 // pred_check_branch
          %233 = sbr.rel (%p231) target = $region52
        $region51: #{tpu_custom_call.1} parent=35 // pred_region
          %234 = dma.done [#allocation10], 16
        $region52: #{tpu_custom_call.1} parent=35 // pred_fallthru
          _
        %235 = sfence
        %s236 = sand.u32 %s32, 1
        %s237 = scalar_lea.sflag [#allocation3], %s236
        %s238 = sand.u32 %s32, 1
        %s239 = smul.addr %s238, 8
        %s240 = scalar_lea.vmem [#allocation2], %s239
        %p241 = pneg %p45
        %p242 = pneg %p42
        %p243 = pneg %p66
        %p244 = pneg %p63
        %p245 = pneg %p87
        %p246 = pneg %p84
        %p247 = pneg %p108
        %p248 = pneg %p105
        %p249 = pneg %p134
        %p250 = pneg %p131
        %s251 = sand.u32 %s121, 1
        %s252 = scalar_lea.sflag [#allocation4], %s251
        %s253 = sand.u32 %s121, 1
        %s254 = smul.addr %s253, 16
        %s255 = scalar_lea.vmem [#allocation11], %s254
        %v256 = vld [vmem:[%s218] sm:$0xff]
        %v258 = vcombine.high %v256, %v256
        %260 = vrot.lane.b32.xlu0 %v256, 17
        %v261 = vpop.permute.xlu0 %260
        %262 = vrot.lane.b32.xlu0 %v258, 17
        %v263 = vpop.permute.xlu0 %262
        %v264 = vlaneseq
        %v265 = vand.u32 %v264, 127
        %vm266 = vcmp.lt.s32.totalorder %v265, 17
        %v267 = vsel %vm266, %v261, %v263
        %v268 = vsel %vm266, %v263, %v261
        %v269 = vld [vmem:[#allocation6] sm:$0xff]
        %v271 = vcombine.high %v269, %v269
        %v273 = vmul.f32 %v268, %v269
        %v274 = vmul.f32 %v267, %v271
        %275 = vrot.lane.b32.xlu0 %v256, 16
        %v276 = vpop.permute.xlu0 %275
        %277 = vrot.lane.b32.xlu0 %v258, 16
        %v278 = vpop.permute.xlu0 %277
        %vm279 = vcmp.lt.s32.totalorder %v265, 16
        %v280 = vsel %vm279, %v276, %v278
        %v281 = vsel %vm279, %v278, %v276
        %s282 = scalar_lea.vmem [#allocation6], 8
        %v283 = vld [vmem:[%s282] sm:$0xff]
        %v285 = vcombine.high %v283, %v283
        %v287 = vmul.f32 %v281, %v283
        %v288 = vmul.f32 %v280, %v285
        %v289 = vadd.f32 %v273, %v287
        %v290 = vadd.f32 %v274, %v288
        %291 = vrot.lane.b32.xlu0 %v256, 15
        %v292 = vpop.permute.xlu0 %291
        %293 = vrot.lane.b32.xlu0 %v258, 15
        %v294 = vpop.permute.xlu0 %293
        %vm295 = vcmp.lt.s32.totalorder %v265, 15
        %v296 = vsel %vm295, %v292, %v294
        %v297 = vsel %vm295, %v294, %v292
        %s298 = scalar_lea.vmem [#allocation6], 16
        %v299 = vld [vmem:[%s298] sm:$0xff]
        %v301 = vcombine.high %v299, %v299
        %v303 = vmul.f32 %v297, %v299
        %v304 = vmul.f32 %v296, %v301
        %v305 = vadd.f32 %v289, %v303
        %v306 = vadd.f32 %v290, %v304
        %307 = vrot.lane.b32.xlu0 %v256, 1
        %v308 = vpop.permute.xlu0 %307
        %309 = vrot.lane.b32.xlu0 %v258, 1
        %v310 = vpop.permute.xlu0 %309
        %vm311 = vcmp.lt.s32.totalorder %v265, 1
        %v312 = vsel %vm311, %v308, %v310
        %v313 = vsel %vm311, %v310, %v308
        %s314 = scalar_lea.vmem [#allocation6], 24
        %v315 = vld [vmem:[%s314] sm:$0xff]
        %v317 = vcombine.high %v315, %v315
        %v319 = vmul.f32 %v313, %v315
        %v320 = vmul.f32 %v312, %v317
        %v321 = vadd.f32 %v305, %v319
        %v322 = vadd.f32 %v306, %v320
        %s323 = scalar_lea.vmem [#allocation6], 32
        %v324 = vld [vmem:[%s323] sm:$0xff]
        %v325 = vmul.f32 %v256, %v324
        %v327 = vcombine.high %v325, %v325
        %v329 = vadd.f32 %v321, %v325
        %v330 = vadd.f32 %v322, %v327
        %331 = vrot.lane.b32.xlu0 %v256, 127
        %v332 = vpop.permute.xlu0 %331
        %333 = vrot.lane.b32.xlu0 %v258, 127
        %v334 = vpop.permute.xlu0 %333
        %vm335 = vcmp.lt.s32.totalorder %v265, 127
        %v336 = vsel %vm335, %v332, %v334
        %v337 = vsel %vm335, %v334, %v332
        %s338 = scalar_lea.vmem [#allocation6], 40
        %v339 = vld [vmem:[%s338] sm:$0xff]
        %v341 = vcombine.high %v339, %v339
        %v343 = vmul.f32 %v336, %v339
        %v344 = vmul.f32 %v337, %v341
        %v345 = vadd.f32 %v329, %v343
        %v346 = vadd.f32 %v330, %v344
        %347 = vrot.lane.b32.xlu0 %v256, 113
        %v348 = vpop.permute.xlu0 %347
        %349 = vrot.lane.b32.xlu0 %v258, 113
        %v350 = vpop.permute.xlu0 %349
        %vm351 = vcmp.lt.s32.totalorder %v265, 113
        %v352 = vsel %vm351, %v348, %v350
        %v353 = vsel %vm351, %v350, %v348
        %s354 = scalar_lea.vmem [#allocation6], 48
        %v355 = vld [vmem:[%s354] sm:$0xff]
        %v357 = vcombine.high %v355, %v355
        %v359 = vmul.f32 %v352, %v355
        %v360 = vmul.f32 %v353, %v357
        %v361 = vadd.f32 %v345, %v359
        %v362 = vadd.f32 %v346, %v360
        %363 = vrot.lane.b32.xlu0 %v256, 112
        %v364 = vpop.permute.xlu0 %363
        %365 = vrot.lane.b32.xlu0 %v258, 112
        %v366 = vpop.permute.xlu0 %365
        %vm367 = vcmp.lt.s32.totalorder %v265, 112
        %v368 = vsel %vm367, %v364, %v366
        %v369 = vsel %vm367, %v366, %v364
        %s370 = scalar_lea.vmem [#allocation6], 56
        %v371 = vld [vmem:[%s370] sm:$0xff]
        %v373 = vcombine.high %v371, %v371
        %v375 = vmul.f32 %v368, %v371
        %v376 = vmul.f32 %v369, %v373
        %v377 = vadd.f32 %v361, %v375
        %v378 = vadd.f32 %v362, %v376
        %379 = vrot.lane.b32.xlu0 %v256, 111
        %v380 = vpop.permute.xlu0 %379
        %381 = vrot.lane.b32.xlu0 %v258, 111
        %v382 = vpop.permute.xlu0 %381
        %vm383 = vcmp.lt.s32.totalorder %v265, 111
        %v384 = vsel %vm383, %v380, %v382
        %v385 = vsel %vm383, %v382, %v380
        %s386 = scalar_lea.vmem [#allocation6], 64
        %v387 = vld [vmem:[%s386] sm:$0xff]
        %v389 = vcombine.high %v387, %v387
        %v391 = vmul.f32 %v384, %v387
        %v392 = vmul.f32 %v385, %v389
        %v393 = vadd.f32 %v377, %v391
        %v394 = vadd.f32 %v378, %v392
        %s395 = sld [smem:[#allocation8]]
        %v396 = vstv %s395
        %v397 = vmul.f32 %v393, %v396
        %v398 = vmul.f32 %v394, %v396
        %s399 = sld [smem:[#allocation9]]
        %v400 = vstv %s399
        %v401 = vadd.f32 %v397, %v400
        %v402 = vadd.f32 %v398, %v400
        %s403 = sld [smem:[#allocation8 + $0x1]]
        %v404 = vstv %s403
        %v405 = vmul.f32 %v393, %v404
        %v406 = vmul.f32 %v394, %v404
        %v409 = vrot.slane %v405, 1
        %v410 = vrot.slane %v406, 1
        %v413 = vadd.f32 %v401, %v409
        %v414 = vadd.f32 %v402, %v410
        %s415 = sld [smem:[#allocation8 + $0x2]]
        %v416 = vstv %s415
        %v417 = vmul.f32 %v393, %v416
        %v418 = vmul.f32 %v394, %v416
        %v421 = vrot.slane %v417, 2
        %v422 = vrot.slane %v418, 2
        %v425 = vadd.f32 %v413, %v421
        %v426 = vadd.f32 %v414, %v422
        %s427 = sld [smem:[#allocation8 + $0x3]]
        %v428 = vstv %s427
        %v429 = vmul.f32 %v393, %v428
        %v430 = vmul.f32 %v394, %v428
        %v433 = vrot.slane %v429, 3
        %v434 = vrot.slane %v430, 3
        %v437 = vadd.f32 %v425, %v433
        %v438 = vadd.f32 %v426, %v434
        %v441 = vcombine.low %v437, %v438
        %v443 = vunpack.c.l.s4 1966171168
        %v444 = vunpack.c.0.s8 %v443
        %v445 = vlaneseq
        %v446 = vshrl.u32 %v445, 7
        %v447 = vsub.s32 %v444, %v446
        %v448 = vrot.slane %v441, %v447
        %v450 = vunpack.c.l.s4 1966171168
        %v451 = vunpack.c.0.s8 %v450
        %v452 = vlaneseq
        %v453 = vshrl.u32 %v452, 7
        %v454 = vsub.s32 %v451, %v453
        %v455 = vrot.slane %v448, %v454
        %v457 = vlaneseq
        %vm458 = vcmp.ge.s32.totalorder %v457, 0
        %vm459 = vcmp.lt.s32.totalorder %v457, 256
        %vm460 = vmand %vm458, %vm459
        %461 = vst.msk [vmem:[%s255] ss:$8 sm:$0x3] %vm460, %v455
        %462 = vst.msk [vmem:[%s255] ss:$8 sm:$0x0] %vm460, %v455
        %s463 = sld [smem:[#allocation8 + $0x4]]
        %v464 = vstv %s463
        %v465 = vmul.f32 %v393, %v464
        %v466 = vmul.f32 %v394, %v464
        %s467 = sld [smem:[#allocation9 + $0x1]]
        %v468 = vstv %s467
        %v469 = vadd.f32 %v465, %v468
        %v470 = vadd.f32 %v466, %v468
        %s471 = sld [smem:[#allocation8 + $0x5]]
        %v472 = vstv %s471
        %v473 = vmul.f32 %v393, %v472
        %v474 = vmul.f32 %v394, %v472
        %v477 = vrot.slane %v473, 1
        %v478 = vrot.slane %v474, 1
        %v481 = vadd.f32 %v469, %v477
        %v482 = vadd.f32 %v470, %v478
        %s483 = sld [smem:[#allocation8 + $0x6]]
        %v484 = vstv %s483
        %v485 = vmul.f32 %v393, %v484
        %v486 = vmul.f32 %v394, %v484
        %v489 = vrot.slane %v485, 2
        %v490 = vrot.slane %v486, 2
        %v493 = vadd.f32 %v481, %v489
        %v494 = vadd.f32 %v482, %v490
        %s495 = sld [smem:[#allocation8 + $0x7]]
        %v496 = vstv %s495
        %v497 = vmul.f32 %v393, %v496
        %v498 = vmul.f32 %v394, %v496
        %v501 = vrot.slane %v497, 3
        %v502 = vrot.slane %v498, 3
        %v505 = vadd.f32 %v493, %v501
        %v506 = vadd.f32 %v494, %v502
        %v509 = vcombine.low %v505, %v506
        %v511 = vunpack.c.l.s4 1966171168
        %v512 = vunpack.c.0.s8 %v511
        %v513 = vlaneseq
        %v514 = vshrl.u32 %v513, 7
        %v515 = vsub.s32 %v512, %v514
        %v516 = vrot.slane %v509, %v515
        %v518 = vunpack.c.l.s4 1966171168
        %v519 = vunpack.c.0.s8 %v518
        %v520 = vlaneseq
        %v521 = vshrl.u32 %v520, 7
        %v522 = vsub.s32 %v519, %v521
        %v523 = vrot.slane %v516, %v522
        %s525 = scalar_lea.vmem %s255, 1 [#allocation11]
        %526 = vst.msk [vmem:[%s525] ss:$8 sm:$0x3] %vm460, %v523
        %527 = vst.msk [vmem:[%s525] ss:$8 sm:$0x0] %vm460, %v523
        %s528 = sld [smem:[#allocation8 + $0x8]]
        %v529 = vstv %s528
        %v530 = vmul.f32 %v393, %v529
        %v531 = vmul.f32 %v394, %v529
        %s532 = sld [smem:[#allocation9 + $0x2]]
        %v533 = vstv %s532
        %v534 = vadd.f32 %v530, %v533
        %v535 = vadd.f32 %v531, %v533
        %s536 = sld [smem:[#allocation8 + $0x9]]
        %v537 = vstv %s536
        %v538 = vmul.f32 %v393, %v537
        %v539 = vmul.f32 %v394, %v537
        %v542 = vrot.slane %v538, 1
        %v543 = vrot.slane %v539, 1
        %v546 = vadd.f32 %v534, %v542
        %v547 = vadd.f32 %v535, %v543
        %s548 = sld [smem:[#allocation8 + $0xa]]
        %v549 = vstv %s548
        %v550 = vmul.f32 %v393, %v549
        %v551 = vmul.f32 %v394, %v549
        %v554 = vrot.slane %v550, 2
        %v555 = vrot.slane %v551, 2
        %v558 = vadd.f32 %v546, %v554
        %v559 = vadd.f32 %v547, %v555
        %s560 = sld [smem:[#allocation8 + $0xb]]
        %v561 = vstv %s560
        %v562 = vmul.f32 %v393, %v561
        %v563 = vmul.f32 %v394, %v561
        %v566 = vrot.slane %v562, 3
        %v567 = vrot.slane %v563, 3
        %v570 = vadd.f32 %v558, %v566
        %v571 = vadd.f32 %v559, %v567
        %v574 = vcombine.low %v570, %v571
        %v576 = vunpack.c.l.s4 1966171168
        %v577 = vunpack.c.0.s8 %v576
        %v578 = vlaneseq
        %v579 = vshrl.u32 %v578, 7
        %v580 = vsub.s32 %v577, %v579
        %v581 = vrot.slane %v574, %v580
        %v583 = vunpack.c.l.s4 1966171168
        %v584 = vunpack.c.0.s8 %v583
        %v585 = vlaneseq
        %v586 = vshrl.u32 %v585, 7
        %v587 = vsub.s32 %v584, %v586
        %v588 = vrot.slane %v581, %v587
        %s590 = scalar_lea.vmem %s255, 2 [#allocation11]
        %591 = vst.msk [vmem:[%s590] ss:$8 sm:$0x3] %vm460, %v588
        %592 = vst.msk [vmem:[%s590] ss:$8 sm:$0x0] %vm460, %v588
        %s593 = sld [smem:[#allocation8 + $0xc]]
        %v594 = vstv %s593
        %v595 = vmul.f32 %v393, %v594
        %v596 = vmul.f32 %v394, %v594
        %s597 = sld [smem:[#allocation9 + $0x3]]
        %v598 = vstv %s597
        %v599 = vadd.f32 %v595, %v598
        %v600 = vadd.f32 %v596, %v598
        %s601 = sld [smem:[#allocation8 + $0xd]]
        %v602 = vstv %s601
        %v603 = vmul.f32 %v393, %v602
        %v604 = vmul.f32 %v394, %v602
        %v607 = vrot.slane %v603, 1
        %v608 = vrot.slane %v604, 1
        %v611 = vadd.f32 %v599, %v607
        %v612 = vadd.f32 %v600, %v608
        %s613 = sld [smem:[#allocation8 + $0xe]]
        %v614 = vstv %s613
        %v615 = vmul.f32 %v393, %v614
        %v616 = vmul.f32 %v394, %v614
        %v619 = vrot.slane %v615, 2
        %v620 = vrot.slane %v616, 2
        %v623 = vadd.f32 %v611, %v619
        %v624 = vadd.f32 %v612, %v620
        %s625 = sld [smem:[#allocation8 + $0xf]]
        %v626 = vstv %s625
        %v627 = vmul.f32 %v393, %v626
        %v628 = vmul.f32 %v394, %v626
        %v631 = vrot.slane %v627, 3
        %v632 = vrot.slane %v628, 3
        %v635 = vadd.f32 %v623, %v631
        %v636 = vadd.f32 %v624, %v632
        %v639 = vcombine.low %v635, %v636
        %v641 = vunpack.c.l.s4 1966171168
        %v642 = vunpack.c.0.s8 %v641
        %v643 = vlaneseq
        %v644 = vshrl.u32 %v643, 7
        %v645 = vsub.s32 %v642, %v644
        %v646 = vrot.slane %v639, %v645
        %v648 = vunpack.c.l.s4 1966171168
        %v649 = vunpack.c.0.s8 %v648
        %v650 = vlaneseq
        %v651 = vshrl.u32 %v650, 7
        %v652 = vsub.s32 %v649, %v651
        %v653 = vrot.slane %v646, %v652
        %s655 = scalar_lea.vmem %s255, 3 [#allocation11]
        %656 = vst.msk [vmem:[%s655] ss:$8 sm:$0x3] %vm460, %v653
        %657 = vst.msk [vmem:[%s655] ss:$8 sm:$0x0] %vm460, %v653
        %s658 = sld [smem:[#allocation8 + $0x10]]
        %v659 = vstv %s658
        %v660 = vmul.f32 %v393, %v659
        %v661 = vmul.f32 %v394, %v659
        %s662 = sld [smem:[#allocation9 + $0x4]]
        %v663 = vstv %s662
        %v664 = vadd.f32 %v660, %v663
        %v665 = vadd.f32 %v661, %v663
        %s666 = sld [smem:[#allocation8 + $0x11]]
        %v667 = vstv %s666
        %v668 = vmul.f32 %v393, %v667
        %v669 = vmul.f32 %v394, %v667
        %v672 = vrot.slane %v668, 1
        %v673 = vrot.slane %v669, 1
        %v676 = vadd.f32 %v664, %v672
        %v677 = vadd.f32 %v665, %v673
        %s678 = sld [smem:[#allocation8 + $0x12]]
        %v679 = vstv %s678
        %v680 = vmul.f32 %v393, %v679
        %v681 = vmul.f32 %v394, %v679
        %v684 = vrot.slane %v680, 2
        %v685 = vrot.slane %v681, 2
        %v688 = vadd.f32 %v676, %v684
        %v689 = vadd.f32 %v677, %v685
        %s690 = sld [smem:[#allocation8 + $0x13]]
        %v691 = vstv %s690
        %v692 = vmul.f32 %v393, %v691
        %v693 = vmul.f32 %v394, %v691
        %v696 = vrot.slane %v692, 3
        %v697 = vrot.slane %v693, 3
        %v700 = vadd.f32 %v688, %v696
        %v701 = vadd.f32 %v689, %v697
        %v704 = vcombine.low %v700, %v701
        %v706 = vunpack.c.l.s4 1966171168
        %v707 = vunpack.c.0.s8 %v706
        %v708 = vlaneseq
        %v709 = vshrl.u32 %v708, 7
        %v710 = vsub.s32 %v707, %v709
        %v711 = vrot.slane %v704, %v710
        %v713 = vunpack.c.l.s4 1966171168
        %v714 = vunpack.c.0.s8 %v713
        %v715 = vlaneseq
        %v716 = vshrl.u32 %v715, 7
        %v717 = vsub.s32 %v714, %v716
        %v718 = vrot.slane %v711, %v717
        %s720 = scalar_lea.vmem %s255, 4 [#allocation11]
        %721 = vst.msk [vmem:[%s720] ss:$8 sm:$0x3] %vm460, %v718
        %722 = vst.msk [vmem:[%s720] ss:$8 sm:$0x0] %vm460, %v718
        %s723 = sld [smem:[#allocation8 + $0x14]]
        %v724 = vstv %s723
        %v725 = vmul.f32 %v393, %v724
        %v726 = vmul.f32 %v394, %v724
        %s727 = sld [smem:[#allocation9 + $0x5]]
        %v728 = vstv %s727
        %v729 = vadd.f32 %v725, %v728
        %v730 = vadd.f32 %v726, %v728
        %s731 = sld [smem:[#allocation8 + $0x15]]
        %v732 = vstv %s731
        %v733 = vmul.f32 %v393, %v732
        %v734 = vmul.f32 %v394, %v732
        %v737 = vrot.slane %v733, 1
        %v738 = vrot.slane %v734, 1
        %v741 = vadd.f32 %v729, %v737
        %v742 = vadd.f32 %v730, %v738
        %s743 = sld [smem:[#allocation8 + $0x16]]
        %v744 = vstv %s743
        %v745 = vmul.f32 %v393, %v744
        %v746 = vmul.f32 %v394, %v744
        %v749 = vrot.slane %v745, 2
        %v750 = vrot.slane %v746, 2
        %v753 = vadd.f32 %v741, %v749
        %v754 = vadd.f32 %v742, %v750
        %s755 = sld [smem:[#allocation8 + $0x17]]
        %v756 = vstv %s755
        %v757 = vmul.f32 %v393, %v756
        %v758 = vmul.f32 %v394, %v756
        %v761 = vrot.slane %v757, 3
        %v762 = vrot.slane %v758, 3
        %v765 = vadd.f32 %v753, %v761
        %v766 = vadd.f32 %v754, %v762
        %v769 = vcombine.low %v765, %v766
        %v771 = vunpack.c.l.s4 1966171168
        %v772 = vunpack.c.0.s8 %v771
        %v773 = vlaneseq
        %v774 = vshrl.u32 %v773, 7
        %v775 = vsub.s32 %v772, %v774
        %v776 = vrot.slane %v769, %v775
        %v778 = vunpack.c.l.s4 1966171168
        %v779 = vunpack.c.0.s8 %v778
        %v780 = vlaneseq
        %v781 = vshrl.u32 %v780, 7
        %v782 = vsub.s32 %v779, %v781
        %v783 = vrot.slane %v776, %v782
        %s785 = scalar_lea.vmem %s255, 5 [#allocation11]
        %786 = vst.msk [vmem:[%s785] ss:$8 sm:$0x3] %vm460, %v783
        %787 = vst.msk [vmem:[%s785] ss:$8 sm:$0x0] %vm460, %v783
        %s788 = sld [smem:[#allocation8 + $0x18]]
        %v789 = vstv %s788
        %v790 = vmul.f32 %v393, %v789
        %v791 = vmul.f32 %v394, %v789
        %s792 = sld [smem:[#allocation9 + $0x6]]
        %v793 = vstv %s792
        %v794 = vadd.f32 %v790, %v793
        %v795 = vadd.f32 %v791, %v793
        %s796 = sld [smem:[#allocation8 + $0x19]]
        %v797 = vstv %s796
        %v798 = vmul.f32 %v393, %v797
        %v799 = vmul.f32 %v394, %v797
        %v802 = vrot.slane %v798, 1
        %v803 = vrot.slane %v799, 1
        %v806 = vadd.f32 %v794, %v802
        %v807 = vadd.f32 %v795, %v803
        %s808 = sld [smem:[#allocation8 + $0x1a]]
        %v809 = vstv %s808
        %v810 = vmul.f32 %v393, %v809
        %v811 = vmul.f32 %v394, %v809
        %v814 = vrot.slane %v810, 2
        %v815 = vrot.slane %v811, 2
        %v818 = vadd.f32 %v806, %v814
        %v819 = vadd.f32 %v807, %v815
        %s820 = sld [smem:[#allocation8 + $0x1b]]
        %v821 = vstv %s820
        %v822 = vmul.f32 %v393, %v821
        %v823 = vmul.f32 %v394, %v821
        %v826 = vrot.slane %v822, 3
        %v827 = vrot.slane %v823, 3
        %v830 = vadd.f32 %v818, %v826
        %v831 = vadd.f32 %v819, %v827
        %v834 = vcombine.low %v830, %v831
        %v836 = vunpack.c.l.s4 1966171168
        %v837 = vunpack.c.0.s8 %v836
        %v838 = vlaneseq
        %v839 = vshrl.u32 %v838, 7
        %v840 = vsub.s32 %v837, %v839
        %v841 = vrot.slane %v834, %v840
        %v843 = vunpack.c.l.s4 1966171168
        %v844 = vunpack.c.0.s8 %v843
        %v845 = vlaneseq
        %v846 = vshrl.u32 %v845, 7
        %v847 = vsub.s32 %v844, %v846
        %v848 = vrot.slane %v841, %v847
        %s850 = scalar_lea.vmem %s255, 6 [#allocation11]
        %851 = vst.msk [vmem:[%s850] ss:$8 sm:$0x3] %vm460, %v848
        %852 = vst.msk [vmem:[%s850] ss:$8 sm:$0x0] %vm460, %v848
        %s853 = sld [smem:[#allocation8 + $0x1c]]
        %v854 = vstv %s853
        %v855 = vmul.f32 %v393, %v854
        %v856 = vmul.f32 %v394, %v854
        %s857 = sld [smem:[#allocation9 + $0x7]]
        %v858 = vstv %s857
        %v859 = vadd.f32 %v855, %v858
        %v860 = vadd.f32 %v856, %v858
        %s861 = sld [smem:[#allocation8 + $0x1d]]
        %v862 = vstv %s861
        %v863 = vmul.f32 %v393, %v862
        %v864 = vmul.f32 %v394, %v862
        %v867 = vrot.slane %v863, 1
        %v868 = vrot.slane %v864, 1
        %v871 = vadd.f32 %v859, %v867
        %v872 = vadd.f32 %v860, %v868
        %s873 = sld [smem:[#allocation8 + $0x1e]]
        %v874 = vstv %s873
        %v875 = vmul.f32 %v393, %v874
        %v876 = vmul.f32 %v394, %v874
        %v879 = vrot.slane %v875, 2
        %v880 = vrot.slane %v876, 2
        %v883 = vadd.f32 %v871, %v879
        %v884 = vadd.f32 %v872, %v880
        %s885 = sld [smem:[#allocation8 + $0x1f]]
        %v886 = vstv %s885
        %v887 = vmul.f32 %v393, %v886
        %v888 = vmul.f32 %v394, %v886
        %v891 = vrot.slane %v887, 3
        %v892 = vrot.slane %v888, 3
        %v895 = vadd.f32 %v883, %v891
        %v896 = vadd.f32 %v884, %v892
        %v899 = vcombine.low %v895, %v896
        %v901 = vunpack.c.l.s4 1966171168
        %v902 = vunpack.c.0.s8 %v901
        %v903 = vlaneseq
        %v904 = vshrl.u32 %v903, 7
        %v905 = vsub.s32 %v902, %v904
        %v906 = vrot.slane %v899, %v905
        %v908 = vunpack.c.l.s4 1966171168
        %v909 = vunpack.c.0.s8 %v908
        %v910 = vlaneseq
        %v911 = vshrl.u32 %v910, 7
        %v912 = vsub.s32 %v909, %v911
        %v913 = vrot.slane %v906, %v912
        %s915 = scalar_lea.vmem %s255, 7 [#allocation11]
        %916 = vst.msk [vmem:[%s915] ss:$8 sm:$0x3] %vm460, %v913
        %917 = vst.msk [vmem:[%s915] ss:$8 sm:$0x0] %vm460, %v913
        %s918 = sand.u32 %s121, 1
        %s919 = scalar_lea.sflag [#allocation4], %s918
        %s920 = sand.u32 %s121, 1
        %s921 = smul.addr %s920, 16
        %s922 = scalar_lea.vmem [#allocation11], %s921
        // Predicated region
        $region53: #{tpu_custom_call.1} parent=35 // pred_check
          %p923 = pneg %p131
        $region54: #{tpu_custom_call.1} parent=35 // pred_check_branch
          %925 = sbr.rel (%p923) target = $region56
        $region55: #{tpu_custom_call.1} parent=35 // pred_region
          %s927 = ssub.s32 256, 256
          %928 = vsyncadd %s919, %s927
          %s929 = smul.addr %s24, 2
          %s930 = smul.addr %s929, 128
          %s931 = scalar_lea.hbm %s4, %s930
          %s933 = sshll.u32 %s922, 4
          %s934 = int_to_ptr.vmem [resolvable:$true] %s933
          %936 = dma.vmem_to_hbm [thread:$0]  %s934, 256, %s931, %s919
        $region56: #{tpu_custom_call.1} parent=35 // pred_fallthru
          _
      $region36: #{tpu_custom_call.1} parent=5 // pred_fallthru
        _
      %p937 = scmp.le.s32.totalorder 2, %s19
      // Predicated region
      $region57: #{tpu_custom_call.1} parent=5 // pred_check
        %p938 = pneg %p937
      $region58: #{tpu_custom_call.1} parent=5 // pred_check_branch
        %940 = sbr.rel (%p938) target = $region60
      $region59: #{tpu_custom_call.1} parent=5 // pred_region
        %s941 = ssub.s32 %s19, 2
        // Predicated region
        $region61: #{tpu_custom_call.1} parent=59 // pred_check
          %p942 = pneg %p137
        $region62: #{tpu_custom_call.1} parent=59 // pred_check_branch
          %944 = sbr.rel (%p942) target = $region64
        $region63: #{tpu_custom_call.1} parent=59 // pred_region
          %s945 = sand.u32 %s122, 1
          %s946 = scalar_lea.sflag [#allocation4], %s945
          %s947 = sand.u32 %s122, 1
          %s948 = smul.addr %s947, 16
          %s949 = scalar_lea.vmem [#allocation11], %s948
          %950 = dma.done %s946, 256
        $region64: #{tpu_custom_call.1} parent=59 // pred_fallthru
          _
      $region60: #{tpu_custom_call.1} parent=5 // pred_fallthru
        _
    $region6: #{tpu_custom_call.1} parent=1 // loop_footer
      %s23 = sadd.s32 1, %s19
    $region7: #{tpu_custom_call.1} parent=1 // loop_footer_branch
      %18 = sbr.rel target = $region3
    $region8: #{tpu_custom_call.1} parent=1 // loop_exit
      _
    %951 = vsyncpa [#allocation3], 1
    %s952 = scalar_lea.sflag [#allocation3], 1
    %953 = vsyncpa %s952, 1
    %954 = vsyncpa [#allocation7], 1
    %955 = vsyncpa [#allocation4], 1
    %s956 = scalar_lea.sflag [#allocation4], 1
    %957 = vsyncpa %s956, 1
    %958 = vsyncpa [#allocation5], 1
    %s959 = scalar_lea.sflag [#allocation5], 1
    %960 = vsyncpa %s959, 1
    %961 = vsyncpa [#allocation10], 1

</llo_original>
